<compile_context>
chip_gen: v5e
topology: v5e:2x2
jax: 0.10.0
libtpu: 0.0.40
codegen_flags: <defaults>
</compile_context>

<pallas_src>
import functools
import math

import jax
import jax.numpy as jnp
from jax.experimental import pallas as pl
from jax.experimental.pallas import tpu as pltpu


def _atten_fusion_kernel(x_ref, o_ref, *, inv_sqrt_dim):
    """x_ref: (L, C, TN) block; o_ref: (C, TN) block (lane-dense output)."""
    L = x_ref.shape[0]

    x0 = x_ref[0].astype(jnp.float32)                      # (C, TN), f32

    # Pass 1: per-cav scores, one (1, TN) row each (never an (L, C, TN) temp).
    # VPU multiply + XLU sublane reduce; MXU deliberately not used (L, C tiny).
    scores = []
    for j in range(L):
        xj = x0 if j == 0 else x_ref[j].astype(jnp.float32)   # (C, TN)
        s = jnp.sum(x0 * xj, axis=0, keepdims=True) * inv_sqrt_dim
        scores.append(s)                                       # (1, TN)

    # Per-lane running max over the cav axis (numerically stable softmax).
    m = scores[0]
    for j in range(1, L):
        m = jnp.maximum(m, scores[j])

    # Pass 2 (fused): exp, denominator and weighted value sum in one sweep.
    den = jnp.zeros_like(m)                                 # (1, TN)
    out = jnp.zeros_like(x0)                                # (C, TN)
    for j in range(L):
        xj = x0 if j == 0 else x_ref[j].astype(jnp.float32)
        e = jnp.exp(scores[j] - m)                          # EUP exp, (1, TN)
        den = den + e
        out = out + e * xj                                  # (1,TN) * (C,TN)

    # Exact reciprocal: the approximate (vrcp) path is too lossy vs. the
    # PyTorch reference; exact divide on one (1, TN) row is negligible.
    inv_den = pl.reciprocal(den, approx=False)
    o_ref[...] = (out * inv_den).astype(o_ref.dtype)


def _vmem_budget_and_limit():
    """(tile-sizing budget, scoped-VMEM limit), derived from the chip.

    v5e/v6e: 128 MiB VMEM per TensorCore; v7x: 64 MiB. Keep ~40% headroom for
    compiler-internal scratch, semaphores, spills and un-modeled temporaries.
    """
    try:
        cap = int(pltpu.get_tpu_info().vmem_capacity_bytes)
    except Exception:
        cap = 64 * 1024 * 1024          # conservative fallback: v7x per-TC
    limit = min(int(cap * 0.60), 96 * 1024 * 1024)
    budget = int(limit * 0.85)
    return budget, limit


def _choose_tile_n(cav_num, C, N, itemsize, vmem_budget_bytes, min_steps=8):
    """Largest 128-multiple spatial tile that (a) fits the VMEM budget with a
    sublane-padded, triple-buffered-input footprint model and (b) leaves at
    least `min_steps` grid steps for DMA pipelining / dual-TC sharding."""
    sublane = max(1, 32 // itemsize)          # 8 f32, 16 bf16, 32 int8
    c_pad = pl.cdiv(C, sublane) * sublane     # honest sublane-padded channels
    # Per spatial lane: 3 pipelined input buffers (L*c_pad) + double-buffered
    # output (c_pad) in the array dtype, ~3 live f32 (c_pad,) working slabs
    # (x0, xj, accumulator) and ~2*(L+1) live f32 score/exp/den rows.
    per_lane = ((3 * cav_num * c_pad + 2 * c_pad) * itemsize
                + 3 * c_pad * 4
                + 2 * (cav_num + 1) * 4)
    max_tile = (vmem_budget_bytes // per_lane) // 128 * 128
    max_tile = max(128, min(max_tile, 2048))
    n_pad128 = pl.cdiv(N, 128) * 128
    step_cap = max(128, (n_pad128 // min_steps) // 128 * 128)
    return min(max_tile, n_pad128, step_cap)


def _input_block_spec(cav_num, C, tile_n, num_steps):
    index_map = lambda i: (0, 0, i)
    if num_steps >= 3:
        try:
            # Third input buffer hides DMA jitter on the HBM-bound v5e/v6e path.
            return pl.BlockSpec((cav_num, C, tile_n), index_map,
                                pipeline_mode=pl.Buffered(3))
        except Exception:
            pass
    return pl.BlockSpec((cav_num, C, tile_n), index_map)


def atten_fusion(x, *, tile_n=None):
    """x: (cav_num, C, H, W) -> (C, H, W), matching AttenFusion.forward."""
    cav_num, C, H, W = x.shape
    N = H * W
    itemsize = jnp.dtype(x.dtype).itemsize

    budget, vmem_limit = _vmem_budget_and_limit()
    if tile_n is None:
        tile_n = _choose_tile_n(cav_num, C, N, itemsize, budget)
    assert tile_n % 128 == 0

    num_steps = pl.cdiv(N, tile_n)
    x_flat = x.reshape(cav_num, C, N)        # spatial (N) on the lane dim

    inv_sqrt_dim = 1.0 / math.sqrt(float(C))
    kernel = functools.partial(_atten_fusion_kernel, inv_sqrt_dim=inv_sqrt_dim)

    cost = pl.CostEstimate(
        flops=int(4 * cav_num * C * N),
        transcendentals=int(cav_num * N),
        bytes_accessed=int((cav_num + 1) * C * N * itemsize),
    )

    out_flat = pl.pallas_call(
        kernel,
        out_shape=jax.ShapeDtypeStruct((C, N), x.dtype),
        grid_spec=pltpu.PrefetchScalarGridSpec(
            num_scalar_prefetch=0,
            grid=(num_steps,),
            in_specs=[_input_block_spec(cav_num, C, tile_n, num_steps)],
            out_specs=pl.BlockSpec((C, tile_n), lambda i: (0, i)),
        ),
        compiler_params=pltpu.CompilerParams(
            dimension_semantics=("parallel",),
            vmem_limit_bytes=vmem_limit,
        ),
        cost_estimate=cost,
    )(x_flat)

    return out_flat.reshape(C, H, W)


def _reference(x):
    """Pure-JAX reference mirroring the PyTorch module exactly."""
    cav_num, C, H, W = x.shape
    xf = x.reshape(cav_num, C, H * W).transpose(2, 0, 1)      # (N, L, C)
    score = jnp.einsum("nic,njc->nij", xf, xf) / jnp.sqrt(jnp.float32(C))
    attn = jax.nn.softmax(score, axis=-1)
    ctx = jnp.einsum("nij,njc->nic", attn, xf)                # (N, L, C)
    return ctx.transpose(1, 2, 0).reshape(cav_num, C, H, W)[0]


if __name__ == "__main__":
    key = jax.random.PRNGKey(0)
    k0, k1, k2 = jax.random.split(key, 3)

    # 1) Small canonical shape (f32).
    x = jax.random.normal(k0, (2, 4, 16, 16), dtype=jnp.float32)
    out = jax.block_until_ready(atten_fusion(x))
    ref = _reference(x)
    assert out.shape == (4, 16, 16)
    assert jnp.allclose(out, ref, atol=1e-3, rtol=1e-3), "mismatch vs reference"

    # 2) Ragged spatial size (N = 120 < 128): exercises the implicit
    #    last-block padding path (no wrapper jnp.pad, no output slice).
    x2 = jax.random.normal(k1, (3, 4, 10, 12), dtype=jnp.float32)
    out2 = jax.block_until_ready(atten_fusion(x2))
    ref2 = _reference(x2)
    assert out2.shape == (4, 10, 12)
    assert jnp.allclose(out2, ref2, atol=1e-3, rtol=1e-3), "mismatch (ragged N)"

    # 3) bf16 input, multi-step grid (exercises the Buffered(3) pipeline path).
    x3 = jax.random.normal(k2, (5, 64, 32, 32), dtype=jnp.bfloat16)
    out3 = jax.block_until_ready(atten_fusion(x3))
    ref3 = _reference(x3.astype(jnp.float32))
    assert out3.shape == (64, 32, 32)
    assert jnp.allclose(out3.astype(jnp.float32), ref3, atol=3e-2, rtol=3e-2), \
        "mismatch (bf16)"

    print("KERNEL_OK")
</pallas_src>

<mosaic_0001>
module attributes {stable_mosaic.version = 11 : i64} {
  func.func @_atten_fusion_kernel(%arg0: i32, %arg1: memref<2x4x128xf32, #tpu.memory_space<vmem>>, %arg2: memref<4x128xf32, #tpu.memory_space<vmem>>) attributes {dimension_semantics = [#tpu.dimension_semantics<parallel>], iteration_bounds = array<i64: 2>, scalar_prefetch = 0 : i64, scratch_operands = 0 : i64, tpu.core_type = #tpu.core_type<tc>, window_params = [{transform_indices = @transform_0, window_bounds = array<i64: 2, 4, 128>}, {transform_indices = @transform_1, window_bounds = array<i64: 4, 128>}]} {
    %c0 = arith.constant 0 : index
    %c0_0 = arith.constant 0 : index
    %c0_1 = arith.constant 0 : index
    %0 = vector.load %arg1[%c0, %c0_0, %c0_1] : memref<2x4x128xf32, #tpu.memory_space<vmem>>, vector<1x4x128xf32>
    %1 = vector.shape_cast %0 : vector<1x4x128xf32> to vector<4x128xf32>
    %2 = arith.mulf %1, %1 : vector<4x128xf32>
    %cst = arith.constant dense<0.000000e+00> : vector<128xf32>
    %3 = vector.multi_reduction <add>, %2, %cst [0] : vector<4x128xf32> to vector<128xf32>
    %4 = vector.shape_cast %3 : vector<128xf32> to vector<1x128xf32>
    %cst_2 = arith.constant 5.000000e-01 : f32
    %5 = vector.broadcast %cst_2 : f32 to vector<1x128xf32>
    %6 = arith.mulf %4, %5 : vector<1x128xf32>
    %c1 = arith.constant 1 : index
    %c0_3 = arith.constant 0 : index
    %c0_4 = arith.constant 0 : index
    %7 = vector.load %arg1[%c1, %c0_3, %c0_4] : memref<2x4x128xf32, #tpu.memory_space<vmem>>, vector<1x4x128xf32>
    %8 = vector.shape_cast %7 : vector<1x4x128xf32> to vector<4x128xf32>
    %9 = arith.mulf %1, %8 : vector<4x128xf32>
    %cst_5 = arith.constant dense<0.000000e+00> : vector<128xf32>
    %10 = vector.multi_reduction <add>, %9, %cst_5 [0] : vector<4x128xf32> to vector<128xf32>
    %11 = vector.shape_cast %10 : vector<128xf32> to vector<1x128xf32>
    %cst_6 = arith.constant 5.000000e-01 : f32
    %12 = vector.broadcast %cst_6 : f32 to vector<1x128xf32>
    %13 = arith.mulf %11, %12 : vector<1x128xf32>
    %14 = arith.maximumf %6, %13 : vector<1x128xf32>
    %cst_7 = arith.constant 0.000000e+00 : f32
    %15 = vector.broadcast %cst_7 : f32 to vector<1x128xf32>
    %cst_8 = arith.constant 0.000000e+00 : f32
    %16 = vector.broadcast %cst_8 : f32 to vector<4x128xf32>
    %17 = arith.subf %6, %14 : vector<1x128xf32>
    %18 = math.exp %17 : vector<1x128xf32>
    %19 = arith.addf %15, %18 : vector<1x128xf32>
    %20 = vector.broadcast %18 : vector<1x128xf32> to vector<4x128xf32>
    %21 = arith.mulf %20, %1 : vector<4x128xf32>
    %22 = arith.addf %16, %21 : vector<4x128xf32>
    %c1_9 = arith.constant 1 : index
    %c0_10 = arith.constant 0 : index
    %c0_11 = arith.constant 0 : index
    %23 = vector.load %arg1[%c1_9, %c0_10, %c0_11] : memref<2x4x128xf32, #tpu.memory_space<vmem>>, vector<1x4x128xf32>
    %24 = vector.shape_cast %23 : vector<1x4x128xf32> to vector<4x128xf32>
    %25 = arith.subf %13, %14 : vector<1x128xf32>
    %26 = math.exp %25 : vector<1x128xf32>
    %27 = arith.addf %19, %26 : vector<1x128xf32>
    %28 = vector.broadcast %26 : vector<1x128xf32> to vector<4x128xf32>
    %29 = arith.mulf %28, %24 : vector<4x128xf32>
    %30 = arith.addf %22, %29 : vector<4x128xf32>
    %31 = tpu.reciprocal %27 : vector<1x128xf32> -> vector<1x128xf32>
    %32 = vector.broadcast %31 : vector<1x128xf32> to vector<4x128xf32>
    %33 = arith.mulf %30, %32 : vector<4x128xf32>
    %c0_12 = arith.constant 0 : index
    %c0_13 = arith.constant 0 : index
    %34 = vector.load %arg2[%c0_12, %c0_13] : memref<4x128xf32, #tpu.memory_space<vmem>>, vector<4x128xf32>
    tpu.vector_store %arg2[%c0_12, %c0_13], %33 {strides = array<i32>} : memref<4x128xf32, #tpu.memory_space<vmem>>, vector<4x128xf32>,
    return
  }
  func.func @transform_0(%arg0: i32) -> (i32, i32, i32) {
    %c0_i32 = arith.constant 0 : i32
    %c0_i32_0 = arith.constant 0 : i32
    %c0_i32_1 = arith.constant 0 : i32
    return %c0_i32, %c0_i32_0, %arg0 : i32, i32, i32
  }
  func.func @transform_1(%arg0: i32) -> (i32, i32) {
    %c0_i32 = arith.constant 0 : i32
    %c0_i32_0 = arith.constant 0 : i32
    return %c0_i32, %arg0 : i32, i32
  }
}

</mosaic_0001>

<llo_original>
// kernel: tpu_custom_call.1
$region0: #{tpu_custom_call.1}
  #allocation0 [shape = 'u32[]', space=smem, size = 0x4, offset = 0x4, fixed_abs, tag = 'smem constant byte address 0x4 - core index']
  #allocation1 [shape = 'u32[72,128]{1,0:T(1,128)}', space=vmem, size = 0x9000, scoped, tag = 'internal scratch']
  %s0 = inlined_call_operand.hbm [shape: f32[2,4,256], index: 0, kind: input, shape index: {}]
  %s1 = inlined_call_operand.hbm [shape: f32[4,256], index: 1, kind: output, shape index: {}]
  %s2 = sld [smem:[#allocation0]]
  $region41: #{tpu_custom_call.1} parent=0
    _
  %s4 = ssub.s32 1, %s2
  %s5 = scalar_select 0, %s4, %s2
  $region1: #{tpu_custom_call.1} parent=0
    #allocation2 [shape = 'u8[8192]{0}', space=vmem, size = 0x2000, scoped, tag = 'input window, operand 0']
    #allocation3 [shape = 's32[2]{0}', space=sflag, size = 0x8, scoped, tag = 'scoped memory for tpu_custom_call.1']
    #allocation4 [shape = 's32[2]{0}', space=sflag, size = 0x8, scoped, tag = 'scoped memory for tpu_custom_call.1']
    #allocation5 [shape = 'u8[4096]{0}', space=vmem, size = 0x1000, scoped, tag = 'output window, operand 0']
    %6 = vsyncpa [#allocation3], 0
    %s7 = scalar_lea.sflag [#allocation3], 1
    %8 = vsyncpa %s7, 0
    %9 = vsyncpa [#allocation4], 0
    %s10 = scalar_lea.sflag [#allocation4], 1
    %11 = vsyncpa %s10, 0
    loop: start=0, step=1, limit=4
    $region2: #{tpu_custom_call.1} parent=1 // loop_pre_header
      _
    $region3: #{tpu_custom_call.1} parent=1 // loop_header
      %s13 = sphi 0, %s17
      %p14 = scmp.ge.s32.totalorder %s13, 4
      %s23 = sphi 0, %s25
      %s26 = sphi 0, %s23
      %s27 = sphi 0, %s26
      %s43 = sphi 0, %s27
      %s49 = sphi 0, %s51
      %s52 = sphi 0, %s49
      %s53 = sphi 0, %s52
      %s69 = sphi 0, %s53
    $region4: #{tpu_custom_call.1} parent=1 // loop_header_branch
      %16 = sbr.rel (%p14) target = $region8
    $region5: #{tpu_custom_call.1} parent=1 // loop_body
      %s18 = ssub.s32 %s13, 1
      %s19 = ssub.s32 %s13, 2
      %s20 = sadd.s32 %s13, 1
      %s21 = ssub.s32 %s13, %s20
      %p22 = scmp.eq.s32.totalorder %s21, 0
      %s24 = sadd.s32 %s23, 1
      %s25 = scalar_select %p22, %s23, %s24
      %p28 = pneg %p22
      %p29 = scmp.eq.s32.totalorder %s13, 1
      %p30 = por %p28, %p29
      %p31 = scmp.ne.s32.totalorder %s23, %s26
      %p32 = scmp.eq.s32.totalorder %s13, 0
      %p33 = por %p31, %p32
      %p34 = scmp.ne.s32.totalorder %s23, %s26
      %p35 = scmp.eq.s32.totalorder %s18, 1
      %p36 = por %p34, %p35
      %p37 = scmp.ne.s32.totalorder %s26, %s27
      %p38 = scmp.eq.s32.totalorder %s18, 0
      %p39 = por %p37, %p38
      %p40 = scmp.ne.s32.totalorder %s26, %s27
      %p41 = scmp.eq.s32.totalorder %s19, 1
      %p42 = por %p40, %p41
      %p44 = scmp.ne.s32.totalorder %s27, %s43
      %p45 = scmp.eq.s32.totalorder %s19, 0
      %p46 = por %p44, %p45
      %s47 = ssub.s32 %s13, %s20
      %p48 = scmp.eq.s32.totalorder %s47, 0
      %s50 = sadd.s32 %s49, 1
      %s51 = scalar_select %p48, %s49, %s50
      %p54 = pneg %p48
      %p55 = scmp.eq.s32.totalorder %s13, 1
      %p56 = por %p54, %p55
      %p57 = scmp.ne.s32.totalorder %s49, %s52
      %p58 = scmp.eq.s32.totalorder %s13, 0
      %p59 = por %p57, %p58
      %p60 = scmp.ne.s32.totalorder %s49, %s52
      %p61 = scmp.eq.s32.totalorder %s18, 1
      %p62 = por %p60, %p61
      %p63 = scmp.ne.s32.totalorder %s52, %s53
      %p64 = scmp.eq.s32.totalorder %s18, 0
      %p65 = por %p63, %p64
      %p66 = scmp.ne.s32.totalorder %s52, %s53
      %p67 = scmp.eq.s32.totalorder %s19, 1
      %p68 = por %p66, %p67
      %p70 = scmp.ne.s32.totalorder %s53, %s69
      %p71 = scmp.eq.s32.totalorder %s19, 0
      %p72 = por %p70, %p71
      %p73 = scmp.le.s32.totalorder 1, %s13
      %p74 = scmp.lt.s32.totalorder %s13, 3
      %p75 = pnand %p73, %p74
      %p76 = pneg %p75
      // Predicated region
      $region9: #{tpu_custom_call.1} parent=5 // pred_check
        _
      $region10: #{tpu_custom_call.1} parent=5 // pred_check_branch
        %78 = sbr.rel (%p75) target = $region12
      $region11: #{tpu_custom_call.1} parent=5 // pred_region
        %s79 = ssub.s32 %s13, 1
      $region12: #{tpu_custom_call.1} parent=5 // pred_fallthru
        _
      %p80 = scmp.lt.s32.totalorder %s13, 2
      // Predicated region
      $region13: #{tpu_custom_call.1} parent=5 // pred_check
        %p81 = pneg %p80
      $region14: #{tpu_custom_call.1} parent=5 // pred_check_branch
        %83 = sbr.rel (%p81) target = $region16
      $region15: #{tpu_custom_call.1} parent=5 // pred_region
        // Predicated region
        $region17: #{tpu_custom_call.1} parent=15 // pred_check
          %p84 = pneg %p33
        $region18: #{tpu_custom_call.1} parent=15 // pred_check_branch
          %86 = sbr.rel (%p84) target = $region20
        $region19: #{tpu_custom_call.1} parent=15 // pred_region
          %s87 = sand.u32 %s23, 1
          %s88 = scalar_lea.sflag [#allocation3], %s87
          %s89 = sand.u32 %s23, 1
          %s90 = smul.addr %s89, 8
          %s91 = scalar_lea.vmem [#allocation2], %s90
          %93 = vsyncadd %s88, 0
          %s94 = smul.addr %s13, 4
          %s95 = scalar_lea.hbm %s0, %s94
          %s96 = sshll.u32 %s95, 4
          %s97 = int_to_ptr.hbm [resolvable:$true] %s96
          %s98 = sshll.u32 %s91, 4
          %s99 = int_to_ptr.vmem [resolvable:$true] %s98
          %104 = dma.hbm_to_vmem [thread:$0]  %s97, 128, %s99, %s88, 128, 64, 4
        $region20: #{tpu_custom_call.1} parent=15 // pred_fallthru
          _
      $region16: #{tpu_custom_call.1} parent=5 // pred_fallthru
        _
      %p105 = scmp.le.s32.totalorder 1, %s13
      %p106 = scmp.lt.s32.totalorder %s13, 3
      %p107 = pnand %p105, %p106
      %p108 = pneg %p107
      // Predicated region
      $region21: #{tpu_custom_call.1} parent=5 // pred_check
        _
      $region22: #{tpu_custom_call.1} parent=5 // pred_check_branch
        %110 = sbr.rel (%p107) target = $region24
      $region23: #{tpu_custom_call.1} parent=5 // pred_region
        %s111 = ssub.s32 %s13, 1
        %s112 = sand.u32 %s26, 1
        %s113 = scalar_lea.sflag [#allocation3], %s112
        %s114 = sand.u32 %s26, 1
        %s115 = smul.addr %s114, 8
        %s116 = scalar_lea.vmem [#allocation2], %s115
        // Predicated region
        $region25: #{tpu_custom_call.1} parent=23 // pred_check
          %p117 = pneg %p39
        $region26: #{tpu_custom_call.1} parent=23 // pred_check_branch
          %119 = sbr.rel (%p117) target = $region28
        $region27: #{tpu_custom_call.1} parent=23 // pred_region
          %121 = dma.done %s113, 128
        $region28: #{tpu_custom_call.1} parent=23 // pred_fallthru
          _
        %s122 = sand.u32 %s26, 1
        %s123 = scalar_lea.sflag [#allocation3], %s122
        %s124 = sand.u32 %s26, 1
        %s125 = smul.addr %s124, 8
        %s126 = scalar_lea.vmem [#allocation2], %s125
        %p127 = pneg %p39
        %p128 = pneg %p36
        %p129 = pneg %p65
        %p130 = pneg %p62
        %s131 = sand.u32 %s52, 1
        %s132 = scalar_lea.sflag [#allocation4], %s131
        %s133 = sand.u32 %s52, 1
        %s134 = smul.addr %s133, 4
        %s135 = scalar_lea.vmem [#allocation5], %s134
        %v136 = vld [vmem:[%s116] sm:$0xf]
        %v137 = vmul.f32 %v136, %v136
        %vm138 = vcmask 1043456
        %v139 = vsel %vm138, %v137, 0.0
        %v140 = vrot.slane %v139, 4
        %v141 = vadd.f32 %v139, %v140
        %v142 = vrot.slane %v141, 2
        %v143 = vadd.f32 %v141, %v142
        %v144 = vrot.slane %v143, 1
        %v145 = vadd.f32 %v143, %v144
        %v146 = vmul.f32 %v145, 0.5
        %s147 = scalar_lea.vmem %s116, 4 [#allocation2]
        %v148 = vld [vmem:[%s147] sm:$0xf]
        %v149 = vmul.f32 %v136, %v148
        %v150 = vsel %vm138, %v149, 0.0
        %v151 = vrot.slane %v150, 4
        %v152 = vadd.f32 %v150, %v151
        %v153 = vrot.slane %v152, 2
        %v154 = vadd.f32 %v152, %v153
        %v155 = vrot.slane %v154, 1
        %v156 = vadd.f32 %v154, %v155
        %v157 = vmul.f32 %v156, 0.5
        %v158 = vmax.f32 %v146, %v157
        %v159 = vsub.f32 %v146, %v158
        %v160 = vmul.f32 %v159, 1.442695
        %v161 = vpow.pop %v160
        %v162 = vadd.f32 %v161, 0.0
        %v163 = vmul.f32 %v161, %v136
        %v164 = vadd.f32 %v163, 0.0
        %v165 = vsub.f32 %v157, %v158
        %v166 = vmul.f32 %v165, 1.442695
        %v167 = vpow.pop %v166
        %v168 = vadd.f32 %v162, %v167
        %v169 = vmul.f32 %v167, %v148
        %v170 = vadd.f32 %v164, %v169
        %v171 = vrcp.pop %v168
        %v172 = vmul.f32 %v168, %v171
        %v173 = vsub.f32 1.0, %v172
        %v174 = vmul.f32 %v171, %v173
        %v175 = vadd.f32 %v171, %v174
        %vm176 = vweird.f32 %v168
        %vm177 = vweird.f32 %v171
        %vm178 = vmor %vm176, %vm177
        %v179 = vsel %vm178, %v171, %v175
        %v180 = vand.u32 2147483647, %v168
        %vm181 = vcmp.eq.f32.partialorder %v180, 8.507059e+37
        %v182 = vand.u32 %v168, 2147483648
        %v183 = vor.u32 1.1754944e-38, %v182
        %v184 = vsel %vm181, %v183, %v179
        %v185 = vmul.f32 %v170, %v184
        %186 = vst [vmem:[%s135] sm:$0xf] %v185
        %s187 = sand.u32 %s52, 1
        %s188 = scalar_lea.sflag [#allocation4], %s187
        %s189 = sand.u32 %s52, 1
        %s190 = smul.addr %s189, 4
        %s191 = scalar_lea.vmem [#allocation5], %s190
        // Predicated region
        $region29: #{tpu_custom_call.1} parent=23 // pred_check
          %p192 = pneg %p62
        $region30: #{tpu_custom_call.1} parent=23 // pred_check_branch
          %194 = sbr.rel (%p192) target = $region32
        $region31: #{tpu_custom_call.1} parent=23 // pred_region
          %196 = vsyncadd %s188, 0
          %s197 = smul.addr %s18, 4
          %s198 = scalar_lea.hbm %s1, %s197
          %s200 = sshll.u32 %s191, 4
          %s201 = int_to_ptr.vmem [resolvable:$true] %s200
          %s202 = sshll.u32 %s198, 4
          %s203 = int_to_ptr.hbm [resolvable:$true] %s202
          %205 = dma.vmem_to_hbm [thread:$0]  %s201, 64, %s203, %s188
        $region32: #{tpu_custom_call.1} parent=23 // pred_fallthru
          _
      $region24: #{tpu_custom_call.1} parent=5 // pred_fallthru
        _
      %p206 = scmp.le.s32.totalorder 2, %s13
      // Predicated region
      $region33: #{tpu_custom_call.1} parent=5 // pred_check
        %p207 = pneg %p206
      $region34: #{tpu_custom_call.1} parent=5 // pred_check_branch
        %209 = sbr.rel (%p207) target = $region36
      $region35: #{tpu_custom_call.1} parent=5 // pred_region
        %s210 = ssub.s32 %s13, 2
        // Predicated region
        $region37: #{tpu_custom_call.1} parent=35 // pred_check
          %p211 = pneg %p68
        $region38: #{tpu_custom_call.1} parent=35 // pred_check_branch
          %213 = sbr.rel (%p211) target = $region40
        $region39: #{tpu_custom_call.1} parent=35 // pred_region
          %s214 = sand.u32 %s53, 1
          %s215 = scalar_lea.sflag [#allocation4], %s214
          %s216 = sand.u32 %s53, 1
          %s217 = smul.addr %s216, 4
          %s218 = scalar_lea.vmem [#allocation5], %s217
          %220 = dma.done %s215, 64
        $region40: #{tpu_custom_call.1} parent=35 // pred_fallthru
          _
      $region36: #{tpu_custom_call.1} parent=5 // pred_fallthru
        _
    $region6: #{tpu_custom_call.1} parent=1 // loop_footer
      %s17 = sadd.s32 1, %s13
    $region7: #{tpu_custom_call.1} parent=1 // loop_footer_branch
      %12 = sbr.rel target = $region3
    $region8: #{tpu_custom_call.1} parent=1 // loop_exit
      _
    %221 = vsyncpa [#allocation3], 1
    %s222 = scalar_lea.sflag [#allocation3], 1
    %223 = vsyncpa %s222, 1
    %224 = vsyncpa [#allocation4], 1
    %s225 = scalar_lea.sflag [#allocation4], 1
    %226 = vsyncpa %s225, 1

</llo_original>
